<compile_context>
chip_gen: v7x
topology: tpu7x:2x2x1
jax: 0.10.0
libtpu: 0.0.40
codegen_flags: <defaults>
</compile_context>

<pallas_src>
import functools

import jax
import jax.numpy as jnp
from jax.experimental import pallas as pl
from jax.experimental.pallas import tpu as pltpu


# --------------------------------------------------------------------------- kernel
def actor_critic_kernel(x_ref, w_ref, b_ref, actor_ref, critic_ref, *,
                        num_hidden, block_dim, num_actions):
    """Fused forward pass, transposed (lane-dense) layout.

    x_ref:      [D, B]          bf16   (feature-major, batch on lanes, zero-padded rows)
    w_ref:      [(L+1)*D, D]    bf16   packed weights: L hidden blocks + 1 head block
    b_ref:      [(L+1)*D, 1]    f32    packed biases
    actor_ref:  [A, B]          f32    softmax over dim=0 of the original [B, A] logits
    critic_ref: [1, B]          f32
    """
    D = block_dim
    h = x_ref[...]                                              # [D, B] bf16
    heads = None
    for l in range(num_hidden + 1):                             # static unrolled loop
        w = w_ref[pl.ds(l * D, D), :]                           # [D, D] bf16 (static view)
        b = b_ref[pl.ds(l * D, D), :]                           # [D, 1] f32
        z = jnp.dot(w, h, preferred_element_type=jnp.float32) + b   # MXU, f32 accumulate
        if l < num_hidden:
            # hidden layer: Tanh in f32, narrow to bf16 only for the next MXU pass
            h = jnp.tanh(z).astype(jnp.bfloat16)
        else:
            heads = z                                           # fused actor+critic head

    # Fused head block: rows 0..A-1 are actor logits, row A is the critic value.
    logits = heads[0:num_actions, :]                            # [A, B] f32
    critic_ref[...] = heads[num_actions:num_actions + 1, :]     # [1, B]

    # F.softmax(dim=0) of the original [B, A] logits == softmax over the batch axis,
    # which is the lane (last) axis in this transposed layout.
    m = jnp.max(logits, axis=-1, keepdims=True)                 # [A, 1]
    e = jnp.exp(logits - m)                                     # [A, B]
    denom = jnp.sum(e, axis=-1, keepdims=True)                  # [A, 1]
    actor_ref[...] = e * pl.reciprocal(denom, approx=True)


# ------------------------------------------------------------------------- wrapper
def actor_critic_forward(x, packed):
    """x: [B, num_inputs] f32.  packed: output of pack_params()."""
    D = packed["block_dim"]
    L = packed["num_hidden"]
    A = packed["num_actions"]
    B, F = x.shape

    # Transpose to [feature, B] (batch on lanes) and zero-pad features to D; cast to
    # bf16 for the MXU.  Zero-padded rows multiply zero-padded weight columns -> no-op.
    xt = jnp.pad(x.astype(jnp.bfloat16).T, ((0, D - F), (0, 0)))   # [D, B]

    kernel = functools.partial(actor_critic_kernel,
                               num_hidden=L, block_dim=D, num_actions=A)
    vmem = pl.BlockSpec(memory_space=pltpu.MemorySpace.VMEM)

    actor_t, critic_t = pl.pallas_call(
        kernel,
        out_shape=(
            jax.ShapeDtypeStruct((A, B), jnp.float32),   # actor, transposed
            jax.ShapeDtypeStruct((1, B), jnp.float32),   # critic, transposed
        ),
        in_specs=[vmem, vmem, vmem],
        out_specs=(vmem, vmem),
    )(xt, packed["w"], packed["b"])

    # Back to PyTorch convention: actor [B, A], critic [B, 1].
    return actor_t.T, critic_t.T


# --------------------------------------------------------------------- param utils
def init_params(key, num_inputs, num_actions, hidden_layers):
    """nn.Linear-style init U(-1/sqrt(fan_in), 1/sqrt(fan_in)); weights [out, in]."""
    params = {}
    dims = [num_inputs] + list(hidden_layers)
    n_linear = len(hidden_layers) + 2
    keys = jax.random.split(key, 2 * n_linear)

    def linear(kw, kb, fan_in, fan_out):
        bound = 1.0 / float(fan_in) ** 0.5
        w = jax.random.uniform(kw, (fan_out, fan_in), jnp.float32, -bound, bound)
        b = jax.random.uniform(kb, (fan_out,), jnp.float32, -bound, bound)
        return w, b

    for l in range(len(hidden_layers)):
        params[f"w{l}"], params[f"b{l}"] = linear(keys[2 * l], keys[2 * l + 1],
                                                  dims[l], dims[l + 1])
    last = dims[-1]
    params["wc"], params["bc"] = linear(keys[-4], keys[-3], last, 1)
    params["wa"], params["ba"] = linear(keys[-2], keys[-1], last, num_actions)
    return params


def pack_params(params, num_inputs, num_actions, hidden_layers):
    """Pack all linear layers into one bf16 weight buffer and one f32 bias buffer.

    Layout: block l (rows l*D:(l+1)*D) holds hidden layer l; the last block holds the
    fused head with actor rows first and the critic row at index A.  All blocks are
    zero-padded to a uniform [D, D], D = round8(max(fan_in/fan_out dims)).
    """
    H = list(hidden_layers)
    L = len(H)
    A = num_actions
    D = max([num_inputs] + H + [A + 1])
    D = -(-D // 8) * 8                      # round up to sublane multiple

    in_dims = [num_inputs] + H
    W = jnp.zeros(((L + 1) * D, D), jnp.float32)
    Bv = jnp.zeros(((L + 1) * D, 1), jnp.float32)
    for l in range(L):
        W = W.at[l * D: l * D + H[l], :in_dims[l]].set(params[f"w{l}"])
        Bv = Bv.at[l * D: l * D + H[l], 0].set(params[f"b{l}"])
    last = H[-1] if L else num_inputs
    wh = jnp.concatenate([params["wa"], params["wc"]], axis=0)     # [A+1, last]
    bh = jnp.concatenate([params["ba"], params["bc"]], axis=0)     # [A+1]
    W = W.at[L * D: L * D + A + 1, :last].set(wh)
    Bv = Bv.at[L * D: L * D + A + 1, 0].set(bh)

    return {"w": W.astype(jnp.bfloat16), "b": Bv,
            "block_dim": int(D), "num_hidden": L, "num_actions": A}


# ----------------------------------------------------------------------- references
def reference_forward_f32(x, params, hidden_layers):
    h = x
    for l in range(len(hidden_layers)):
        h = jnp.tanh(h @ params[f"w{l}"].T + params[f"b{l}"])
    critic = h @ params["wc"].T + params["bc"]
    logits = h @ params["wa"].T + params["ba"]
    actor = jax.nn.softmax(logits, axis=0)     # dim=0, as in the PyTorch reference
    return actor, critic


def reference_forward_bf16(x, params, hidden_layers):
    """Simulates the kernel's precision policy: bf16 MXU operands, f32 accumulation."""
    h = x.astype(jnp.bfloat16)
    for l in range(len(hidden_layers)):
        w = params[f"w{l}"].astype(jnp.bfloat16)
        z = jnp.dot(h, w.T, preferred_element_type=jnp.float32) + params[f"b{l}"]
        h = jnp.tanh(z).astype(jnp.bfloat16)
    wc = params["wc"].astype(jnp.bfloat16)
    wa = params["wa"].astype(jnp.bfloat16)
    critic = jnp.dot(h, wc.T, preferred_element_type=jnp.float32) + params["bc"]
    logits = jnp.dot(h, wa.T, preferred_element_type=jnp.float32) + params["ba"]
    actor = jax.nn.softmax(logits, axis=0)
    return actor, critic


# ------------------------------------------------------------------------------ main
if __name__ == "__main__":
    key = jax.random.PRNGKey(0)
    k_x, k_p = jax.random.split(key)

    # Small shapes consistent with the module (connect-four-ish sizes).
    B = 8
    num_inputs = 16
    num_actions = 8
    hidden_layers = (32, 32)

    x = jax.random.normal(k_x, (B, num_inputs), dtype=jnp.float32)
    params = init_params(k_p, num_inputs, num_actions, hidden_layers)
    packed = pack_params(params, num_inputs, num_actions, hidden_layers)

    actor, critic = actor_critic_forward(x, packed)
    jax.block_until_ready((actor, critic))

    assert actor.shape == (B, num_actions)
    assert critic.shape == (B, 1)

    # Tight check vs a reference that mirrors the kernel's bf16-operand policy.
    a_bf, c_bf = reference_forward_bf16(x, params, hidden_layers)
    assert jnp.allclose(actor, a_bf, atol=2e-3), float(jnp.max(jnp.abs(actor - a_bf)))
    assert jnp.allclose(critic, c_bf, atol=2e-3), float(jnp.max(jnp.abs(critic - c_bf)))

    # Looser sanity check vs the full-f32 reference (bf16 MXU operand tolerance).
    a_f32, c_f32 = reference_forward_f32(x, params, hidden_layers)
    assert jnp.allclose(actor, a_f32, atol=2e-2), float(jnp.max(jnp.abs(actor - a_f32)))
    assert jnp.allclose(critic, c_f32, atol=3e-2, rtol=3e-2), \
        float(jnp.max(jnp.abs(critic - c_f32)))

    # softmax over dim=0: each action column sums to 1 across the batch.
    assert jnp.allclose(jnp.sum(actor, axis=0), jnp.ones((num_actions,)), atol=5e-3)

    print("KERNEL_OK")
</pallas_src>

<mosaic_0001>
module attributes {stable_mosaic.version = 11 : i64} {
  func.func @actor_critic_kernel(%arg0: memref<32x8xbf16, #tpu.memory_space<vmem>>, %arg1: memref<96x32xbf16, #tpu.memory_space<vmem>>, %arg2: memref<96x1xf32, #tpu.memory_space<vmem>>, %arg3: memref<8x8xf32, #tpu.memory_space<vmem>>, %arg4: memref<1x8xf32, #tpu.memory_space<vmem>>) attributes {dimension_semantics = [], scalar_prefetch = 0 : i64, scratch_operands = 0 : i64, tpu.core_type = #tpu.core_type<tc>} {
    %c0 = arith.constant 0 : index
    %c0_0 = arith.constant 0 : index
    %0 = vector.load %arg0[%c0, %c0_0] : memref<32x8xbf16, #tpu.memory_space<vmem>>, vector<32x8xbf16>
    %c0_1 = arith.constant 0 : index
    %c0_2 = arith.constant 0 : index
    %1 = vector.load %arg1[%c0_1, %c0_2] : memref<96x32xbf16, #tpu.memory_space<vmem>>, vector<32x32xbf16>
    %c0_3 = arith.constant 0 : index
    %c0_4 = arith.constant 0 : index
    %2 = vector.load %arg2[%c0_3, %c0_4] : memref<96x1xf32, #tpu.memory_space<vmem>>, vector<32x1xf32>
    %cst = arith.constant dense<0.000000e+00> : vector<32x8xf32>
    %3 = tpu.matmul %1, %0, %cst {dimension_numbers = #tpu.dot_dimension_numbers<[1], [0], [0], [1], [0, 0, 1, 1], [], []>} : vector<32x32xbf16>, vector<32x8xbf16>, vector<32x8xf32> -> vector<32x8xf32>
    %4 = vector.broadcast %2 : vector<32x1xf32> to vector<32x8xf32>
    %5 = arith.addf %3, %4 : vector<32x8xf32>
    %6 = math.tanh %5 : vector<32x8xf32>
    %7 = arith.truncf %6 : vector<32x8xf32> to vector<32x8xbf16>
    %c32 = arith.constant 32 : index
    %c0_5 = arith.constant 0 : index
    %8 = vector.load %arg1[%c32, %c0_5] : memref<96x32xbf16, #tpu.memory_space<vmem>>, vector<32x32xbf16>
    %c32_6 = arith.constant 32 : index
    %c0_7 = arith.constant 0 : index
    %9 = vector.load %arg2[%c32_6, %c0_7] : memref<96x1xf32, #tpu.memory_space<vmem>>, vector<32x1xf32>
    %cst_8 = arith.constant dense<0.000000e+00> : vector<32x8xf32>
    %10 = tpu.matmul %8, %7, %cst_8 {dimension_numbers = #tpu.dot_dimension_numbers<[1], [0], [0], [1], [0, 0, 1, 1], [], []>} : vector<32x32xbf16>, vector<32x8xbf16>, vector<32x8xf32> -> vector<32x8xf32>
    %11 = vector.broadcast %9 : vector<32x1xf32> to vector<32x8xf32>
    %12 = arith.addf %10, %11 : vector<32x8xf32>
    %13 = math.tanh %12 : vector<32x8xf32>
    %14 = arith.truncf %13 : vector<32x8xf32> to vector<32x8xbf16>
    %c64 = arith.constant 64 : index
    %c0_9 = arith.constant 0 : index
    %15 = vector.load %arg1[%c64, %c0_9] : memref<96x32xbf16, #tpu.memory_space<vmem>>, vector<32x32xbf16>
    %c64_10 = arith.constant 64 : index
    %c0_11 = arith.constant 0 : index
    %16 = vector.load %arg2[%c64_10, %c0_11] : memref<96x1xf32, #tpu.memory_space<vmem>>, vector<32x1xf32>
    %cst_12 = arith.constant dense<0.000000e+00> : vector<32x8xf32>
    %17 = tpu.matmul %15, %14, %cst_12 {dimension_numbers = #tpu.dot_dimension_numbers<[1], [0], [0], [1], [0, 0, 1, 1], [], []>} : vector<32x32xbf16>, vector<32x8xbf16>, vector<32x8xf32> -> vector<32x8xf32>
    %18 = vector.broadcast %16 : vector<32x1xf32> to vector<32x8xf32>
    %19 = arith.addf %17, %18 : vector<32x8xf32>
    %20 = vector.extract_strided_slice %19 {offsets = [0, 0], sizes = [8, 8], strides = [1, 1]} : vector<32x8xf32> to vector<8x8xf32>
    %21 = vector.extract_strided_slice %19 {offsets = [8, 0], sizes = [1, 8], strides = [1, 1]} : vector<32x8xf32> to vector<1x8xf32>
    %c0_13 = arith.constant 0 : index
    %c0_14 = arith.constant 0 : index
    %22 = vector.load %arg4[%c0_13, %c0_14] : memref<1x8xf32, #tpu.memory_space<vmem>>, vector<1x8xf32>
    tpu.vector_store %arg4[%c0_13, %c0_14], %21 {strides = array<i32>} : memref<1x8xf32, #tpu.memory_space<vmem>>, vector<1x8xf32>,
    %cst_15 = arith.constant dense<0xFF800000> : vector<8xf32>
    %23 = vector.multi_reduction <maximumf>, %20, %cst_15 [1] : vector<8x8xf32> to vector<8xf32>
    %24 = vector.shape_cast %23 : vector<8xf32> to vector<8x1xf32>
    %25 = vector.broadcast %24 : vector<8x1xf32> to vector<8x8xf32>
    %26 = arith.subf %20, %25 : vector<8x8xf32>
    %27 = math.exp %26 : vector<8x8xf32>
    %cst_16 = arith.constant dense<0.000000e+00> : vector<8xf32>
    %28 = vector.multi_reduction <add>, %27, %cst_16 [1] : vector<8x8xf32> to vector<8xf32>
    %29 = vector.shape_cast %28 : vector<8xf32> to vector<8x1xf32>
    %30 = tpu.reciprocal %29 {approx = true} : vector<8x1xf32> -> vector<8x1xf32>
    %31 = vector.broadcast %30 : vector<8x1xf32> to vector<8x8xf32>
    %32 = arith.mulf %27, %31 : vector<8x8xf32>
    %c0_17 = arith.constant 0 : index
    %c0_18 = arith.constant 0 : index
    %33 = vector.load %arg3[%c0_17, %c0_18] : memref<8x8xf32, #tpu.memory_space<vmem>>, vector<8x8xf32>
    tpu.vector_store %arg3[%c0_17, %c0_18], %32 {strides = array<i32>} : memref<8x8xf32, #tpu.memory_space<vmem>>, vector<8x8xf32>,
    return
  }
}

</mosaic_0001>

<llo_original>
// kernel: tpu_custom_call.1
$region0: #{tpu_custom_call.1}
  #allocation0 [shape = 'u32[]', space=smem, size = 0x4, offset = 0x4, fixed_abs, tag = 'smem constant byte address 0x4 - core index']
  #allocation1 [shape = 'u32[144,128]{1,0:T(1,128)}', space=vmem, size = 0x12000, scoped, tag = 'internal scratch']
  %s0 = inlined_call_operand.vmem [shape: bf16[32,8], index: 0, kind: input, shape index: {}]
  %s1 = inlined_call_operand.vmem [shape: bf16[96,32], index: 1, kind: input, shape index: {}]
  %s2 = inlined_call_operand.vmem [shape: f32[96,1], index: 2, kind: input, shape index: {}]
  %s3 = inlined_call_operand.hbm [shape: f32[8,8], index: 3, kind: output, shape index: {0}]
  %s4 = inlined_call_operand.hbm [shape: f32[1,8], index: 4, kind: output, shape index: {1}]
  %5 = xla_tuple %s3, %s4
  %s6 = sld [smem:[#allocation0]]
  $region30: #{tpu_custom_call.1} parent=0
    _
  %s8 = ssub.s32 1, %s6
  %s9 = scalar_select 0, %s8, %s6
  $region1: #{tpu_custom_call.1} parent=0
    #allocation2 [shape = 'u8[4096]{0}', space=vmem, size = 0x1000, scoped, tag = 'output window, operand 0, single buffered']
    #allocation3 [shape = 's32[1]{0}', space=sflag, size = 0x4, scoped, tag = 'scoped memory for tpu_custom_call.1']
    #allocation4 [shape = 'u8[512]{0}', space=vmem, size = 0x400, scoped, tag = 'output window, operand 1, single buffered']
    #allocation5 [shape = 's32[1]{0}', space=sflag, size = 0x4, scoped, tag = 'scoped memory for tpu_custom_call.1']
    %10 = vsyncpa [#allocation3], 0
    %11 = vsyncpa [#allocation5], 0
    // Predicated region
    $region2: #{tpu_custom_call.1} parent=1 // pred_check
      _
    $region3: #{tpu_custom_call.1} parent=1 // pred_check_branch
      %13 = sbr.rel (0) target = $region5
    $region4: #{tpu_custom_call.1} parent=1 // pred_region
      _
    $region5: #{tpu_custom_call.1} parent=1 // pred_fallthru
      _
    // Predicated region
    $region6: #{tpu_custom_call.1} parent=1 // pred_check
      _
    $region7: #{tpu_custom_call.1} parent=1 // pred_check_branch
      %15 = sbr.rel (0) target = $region9
    $region8: #{tpu_custom_call.1} parent=1 // pred_region
      _
    $region9: #{tpu_custom_call.1} parent=1 // pred_fallthru
      _
    // Predicated region
    $region10: #{tpu_custom_call.1} parent=1 // pred_check
      _
    $region11: #{tpu_custom_call.1} parent=1 // pred_check_branch
      %17 = sbr.rel (0) target = $region13
    $region12: #{tpu_custom_call.1} parent=1 // pred_region
      _
    $region13: #{tpu_custom_call.1} parent=1 // pred_fallthru
      _
    %v19 = vld [vmem:[%s0] sm:$0xf]
    %v20 = vld [vmem:[%s0 + $0x4] sm:$0xf]
    %v21 = vld [vmem:[%s0 + $0x8] sm:$0xf]
    %v22 = vld [vmem:[%s0 + $0xc] sm:$0xf]
    %v23 = vld [vmem:[%s1] sm:$0xf]
    %v24 = vld [vmem:[%s1 + $0x4] sm:$0xf]
    %v25 = vld [vmem:[%s1 + $0x8] sm:$0xf]
    %v26 = vld [vmem:[%s1 + $0xc] sm:$0xf]
    %v27 = vld [vmem:[%s2] sm:$0xff]
    %v28 = vld [vmem:[%s2 + $0x8] sm:$0xff]
    %v29 = vld [vmem:[%s2 + $0x10] sm:$0xff]
    %v30 = vld [vmem:[%s2 + $0x18] sm:$0xff]
    %32 = vset.pattern.permute.xlu0 0
    %33 = vperm.xlu0 %32, %v27
    %v34 = vpop.permute.xlu0 %33
    %37 = vset.pattern.permute.xlu0 0
    %38 = vperm.xlu0 %37, %v28
    %v39 = vpop.permute.xlu0 %38
    %42 = vset.pattern.permute.xlu0 0
    %43 = vperm.xlu0 %42, %v29
    %v44 = vpop.permute.xlu0 %43
    %47 = vset.pattern.permute.xlu0 0
    %48 = vperm.xlu0 %47, %v30
    %v49 = vpop.permute.xlu0 %48
    %v55 = vunpack.c.l.b16 %v23
    %v56 = vunpack.c.l.b16 %v24
    %v57 = vunpack.c.l.b16 %v25
    %v58 = vunpack.c.l.b16 %v26
    %v59 = vpack.c.b16 %v56, %v55
    %v60 = vpack.c.b16 %v58, %v57
    %v65 = vunpack.c.l.b16 %v19
    %v66 = vunpack.c.l.b16 %v20
    %v67 = vunpack.c.l.b16 %v21
    %v68 = vunpack.c.l.b16 %v22
    %v69 = vpack.c.b16 %v66, %v65
    %v70 = vpack.c.b16 %v68, %v67
    %vm73 = vcmask 261120
    %v75 = vsel %vm73, %v59, 0
    %v78 = vsel %vm73, %v60, 0
    %80 = vmatprep.subr.bf16.mxu0 0
    %81 = vmatpush1.bf16.msra.mxu0 %v69
    %82 = vmatprep.subr.bf16.mxu0 0
    %83 = vmatpush1.bf16.msra.mxu0 %v70
    %84 = vmatprep.subr.bf16.mxu0 0
    %85 = vmatpush1.bf16.msra.mxu0 0
    %86 = vmatprep.subr.bf16.mxu0 0
    %87 = vmatpush1.bf16.msra.mxu0 0
    %88 = vmatprep.subr.bf16.mxu0 0
    %89 = vmatpush1.bf16.msra.mxu0 0
    %90 = vmatprep.subr.bf16.mxu0 0
    %91 = vmatpush1.bf16.msra.mxu0 0
    %92 = vmatprep.subr.bf16.mxu0 0
    %93 = vmatpush1.bf16.msra.mxu0 0
    %94 = vmatprep.subr.bf16.mxu0 0
    %95 = vmatpush1.bf16.msra.mxu0 0
    %96 = vmatprep.subr.bf16.mxu0 0
    %97 = vmatpush1.bf16.msra.mxu0 0
    %98 = vmatprep.subr.bf16.mxu0 0
    %99 = vmatpush1.bf16.msra.mxu0 0
    %100 = vmatprep.subr.bf16.mxu0 0
    %101 = vmatpush1.bf16.msra.mxu0 0
    %102 = vmatprep.subr.bf16.mxu0 0
    %103 = vmatpush1.bf16.msra.mxu0 0
    %104 = vmatprep.subr.bf16.mxu0 0
    %105 = vmatpush1.bf16.msra.mxu0 0
    %106 = vmatprep.subr.bf16.mxu0 0
    %107 = vmatpush1.bf16.msra.mxu0 0
    %108 = vmatprep.subr.bf16.mxu0 0
    %109 = vmatpush1.bf16.msra.mxu0 0
    %110 = vmatprep.subr.bf16.mxu0 0
    %111 = vmatpush1.bf16.msra.mxu0 0
    %112 = vmatprep.mubr.bf16.mxu0 0
    %113 = vmatmul.mubr.bf16.gmra.mrb[0].mxu0 %v75
    %v114 = vpop.f32.mrb[0].mxu0
    %v115 = vadd.f32 %v34, %v114
    %v116 = vpop.f32.mrb[0].mxu0
    %v117 = vpop.f32.mrb[0].mxu0
    %v118 = vadd.f32 %v39, %v117
    %v119 = vpop.f32.mrb[0].mxu0
    %120 = vmatprep.mubr.bf16.mxu0 0
    %121 = vmatmul.mubr.bf16.gmra.mrb[0].mxu0 %v78
    %v122 = vpop.f32.mrb[0].mxu0
    %v123 = vadd.f32 %v44, %v122
    %v124 = vpop.f32.mrb[0].mxu0
    %v125 = vpop.f32.mrb[0].mxu0
    %v126 = vadd.f32 %v49, %v125
    %v127 = vpop.f32.mrb[0].mxu0
    %128 = vdwg.mxu0
    %v129 = vtanh.pop %v115
    %v130 = vtanh.pop %v118
    %v131 = vtanh.pop %v123
    %v132 = vtanh.pop %v126
    %v133 = vpack.c.bf16 %v130, %v129
    %v134 = vpack.c.bf16 %v132, %v131
    %v135 = vld [vmem:[%s1 + $0x10] sm:$0xf]
    %v136 = vld [vmem:[%s1 + $0x14] sm:$0xf]
    %v137 = vld [vmem:[%s1 + $0x18] sm:$0xf]
    %v138 = vld [vmem:[%s1 + $0x1c] sm:$0xf]
    %v139 = vld [vmem:[%s2 + $0x20] sm:$0xff]
    %v140 = vld [vmem:[%s2 + $0x28] sm:$0xff]
    %v141 = vld [vmem:[%s2 + $0x30] sm:$0xff]
    %v142 = vld [vmem:[%s2 + $0x38] sm:$0xff]
    %144 = vset.pattern.permute.xlu0 0
    %145 = vperm.xlu0 %144, %v139
    %v146 = vpop.permute.xlu0 %145
    %149 = vset.pattern.permute.xlu0 0
    %150 = vperm.xlu0 %149, %v140
    %v151 = vpop.permute.xlu0 %150
    %154 = vset.pattern.permute.xlu0 0
    %155 = vperm.xlu0 %154, %v141
    %v156 = vpop.permute.xlu0 %155
    %159 = vset.pattern.permute.xlu0 0
    %160 = vperm.xlu0 %159, %v142
    %v161 = vpop.permute.xlu0 %160
    %v167 = vunpack.c.l.b16 %v135
    %v168 = vunpack.c.l.b16 %v136
    %v169 = vunpack.c.l.b16 %v137
    %v170 = vunpack.c.l.b16 %v138
    %v171 = vpack.c.b16 %v168, %v167
    %v172 = vpack.c.b16 %v170, %v169
    %v174 = vsel %vm73, %v171, 0
    %v177 = vsel %vm73, %v172, 0
    %179 = vmatprep.subr.bf16.mxu0 0
    %180 = vmatpush1.bf16.msra.mxu0 %v133
    %181 = vmatprep.subr.bf16.mxu0 0
    %182 = vmatpush1.bf16.msra.mxu0 %v134
    %183 = vmatprep.subr.bf16.mxu0 0
    %184 = vmatpush1.bf16.msra.mxu0 0
    %185 = vmatprep.subr.bf16.mxu0 0
    %186 = vmatpush1.bf16.msra.mxu0 0
    %187 = vmatprep.subr.bf16.mxu0 0
    %188 = vmatpush1.bf16.msra.mxu0 0
    %189 = vmatprep.subr.bf16.mxu0 0
    %190 = vmatpush1.bf16.msra.mxu0 0
    %191 = vmatprep.subr.bf16.mxu0 0
    %192 = vmatpush1.bf16.msra.mxu0 0
    %193 = vmatprep.subr.bf16.mxu0 0
    %194 = vmatpush1.bf16.msra.mxu0 0
    %195 = vmatprep.subr.bf16.mxu0 0
    %196 = vmatpush1.bf16.msra.mxu0 0
    %197 = vmatprep.subr.bf16.mxu0 0
    %198 = vmatpush1.bf16.msra.mxu0 0
    %199 = vmatprep.subr.bf16.mxu0 0
    %200 = vmatpush1.bf16.msra.mxu0 0
    %201 = vmatprep.subr.bf16.mxu0 0
    %202 = vmatpush1.bf16.msra.mxu0 0
    %203 = vmatprep.subr.bf16.mxu0 0
    %204 = vmatpush1.bf16.msra.mxu0 0
    %205 = vmatprep.subr.bf16.mxu0 0
    %206 = vmatpush1.bf16.msra.mxu0 0
    %207 = vmatprep.subr.bf16.mxu0 0
    %208 = vmatpush1.bf16.msra.mxu0 0
    %209 = vmatprep.subr.bf16.mxu0 0
    %210 = vmatpush1.bf16.msra.mxu0 0
    %211 = vmatprep.mubr.bf16.mxu0 0
    %212 = vmatmul.mubr.bf16.gmra.mrb[0].mxu0 %v174
    %v213 = vpop.f32.mrb[0].mxu0
    %v214 = vadd.f32 %v146, %v213
    %v215 = vpop.f32.mrb[0].mxu0
    %v216 = vpop.f32.mrb[0].mxu0
    %v217 = vadd.f32 %v151, %v216
    %v218 = vpop.f32.mrb[0].mxu0
    %219 = vmatprep.mubr.bf16.mxu0 0
    %220 = vmatmul.mubr.bf16.gmra.mrb[0].mxu0 %v177
    %v221 = vpop.f32.mrb[0].mxu0
    %v222 = vadd.f32 %v156, %v221
    %v223 = vpop.f32.mrb[0].mxu0
    %v224 = vpop.f32.mrb[0].mxu0
    %v225 = vadd.f32 %v161, %v224
    %v226 = vpop.f32.mrb[0].mxu0
    %227 = vdwg.mxu0
    %v228 = vtanh.pop %v214
    %v229 = vtanh.pop %v217
    %v230 = vtanh.pop %v222
    %v231 = vtanh.pop %v225
    %v232 = vpack.c.bf16 %v229, %v228
    %v233 = vpack.c.bf16 %v231, %v230
    %v234 = vld [vmem:[%s1 + $0x20] sm:$0xf]
    %v235 = vld [vmem:[%s1 + $0x24] sm:$0xf]
    %v236 = vld [vmem:[%s1 + $0x28] sm:$0xf]
    %v237 = vld [vmem:[%s1 + $0x2c] sm:$0xf]
    %v238 = vld [vmem:[%s2 + $0x40] sm:$0xff]
    %v239 = vld [vmem:[%s2 + $0x48] sm:$0xff]
    %v240 = vld [vmem:[%s2 + $0x50] sm:$0xff]
    %v241 = vld [vmem:[%s2 + $0x58] sm:$0xff]
    %243 = vset.pattern.permute.xlu0 0
    %244 = vperm.xlu0 %243, %v238
    %v245 = vpop.permute.xlu0 %244
    %248 = vset.pattern.permute.xlu0 0
    %249 = vperm.xlu0 %248, %v239
    %v250 = vpop.permute.xlu0 %249
    %253 = vset.pattern.permute.xlu0 0
    %254 = vperm.xlu0 %253, %v240
    %v255 = vpop.permute.xlu0 %254
    %257 = vset.pattern.permute.xlu0 0
    %258 = vperm.xlu0 %257, %v241
    %v259 = vpop.permute.xlu0 %258
    %v264 = vunpack.c.l.b16 %v234
    %v265 = vunpack.c.l.b16 %v235
    %v266 = vunpack.c.l.b16 %v236
    %v267 = vunpack.c.l.b16 %v237
    %v268 = vpack.c.b16 %v265, %v264
    %v269 = vpack.c.b16 %v267, %v266
    %v271 = vsel %vm73, %v268, 0
    %v274 = vsel %vm73, %v269, 0
    %276 = vmatprep.subr.bf16.mxu0 0
    %277 = vmatpush1.bf16.msra.mxu0 %v232
    %278 = vmatprep.subr.bf16.mxu0 0
    %279 = vmatpush1.bf16.msra.mxu0 %v233
    %280 = vmatprep.subr.bf16.mxu0 0
    %281 = vmatpush1.bf16.msra.mxu0 0
    %282 = vmatprep.subr.bf16.mxu0 0
    %283 = vmatpush1.bf16.msra.mxu0 0
    %284 = vmatprep.subr.bf16.mxu0 0
    %285 = vmatpush1.bf16.msra.mxu0 0
    %286 = vmatprep.subr.bf16.mxu0 0
    %287 = vmatpush1.bf16.msra.mxu0 0
    %288 = vmatprep.subr.bf16.mxu0 0
    %289 = vmatpush1.bf16.msra.mxu0 0
    %290 = vmatprep.subr.bf16.mxu0 0
    %291 = vmatpush1.bf16.msra.mxu0 0
    %292 = vmatprep.subr.bf16.mxu0 0
    %293 = vmatpush1.bf16.msra.mxu0 0
    %294 = vmatprep.subr.bf16.mxu0 0
    %295 = vmatpush1.bf16.msra.mxu0 0
    %296 = vmatprep.subr.bf16.mxu0 0
    %297 = vmatpush1.bf16.msra.mxu0 0
    %298 = vmatprep.subr.bf16.mxu0 0
    %299 = vmatpush1.bf16.msra.mxu0 0
    %300 = vmatprep.subr.bf16.mxu0 0
    %301 = vmatpush1.bf16.msra.mxu0 0
    %302 = vmatprep.subr.bf16.mxu0 0
    %303 = vmatpush1.bf16.msra.mxu0 0
    %304 = vmatprep.subr.bf16.mxu0 0
    %305 = vmatpush1.bf16.msra.mxu0 0
    %306 = vmatprep.subr.bf16.mxu0 0
    %307 = vmatpush1.bf16.msra.mxu0 0
    %308 = vmatprep.mubr.bf16.mxu0 0
    %309 = vmatmul.mubr.bf16.gmra.mrb[0].mxu0 %v271
    %v310 = vpop.f32.mrb[0].mxu0
    %v311 = vadd.f32 %v245, %v310
    %v312 = vpop.f32.mrb[0].mxu0
    %v313 = vpop.f32.mrb[0].mxu0
    %v314 = vadd.f32 %v250, %v313
    %v315 = vpop.f32.mrb[0].mxu0
    %316 = vmatprep.mubr.bf16.mxu0 0
    %317 = vmatmul.mubr.bf16.gmra.mrb[0].mxu0 %v274
    %v318 = vpop.f32.mrb[0].mxu0
    %v319 = vpop.f32.mrb[0].mxu0
    %v320 = vpop.f32.mrb[0].mxu0
    %v321 = vpop.f32.mrb[0].mxu0
    %322 = vdwg.mxu0
    %vm323 = vcmask 57344
    %324 = vst.msk [vmem:[#allocation4] sm:$0x1] %vm323, %v314
    %vm325 = vcmask 64512
    %v326 = vsel %vm325, %v311, -inf
    %327 = vmax.xlane.f32.xlu0 %v326
    %v328 = vpop.xlane.xlu0 %327
    %v329 = vsub.f32 %v311, %v328
    %v330 = vmul.f32 %v329, 1.442695
    %v331 = vpow.pop %v330
    %v332 = vsel %vm325, %v331, 0.0
    %333 = vadd.xlane.f32.xlu0 %v332
    %v334 = vpop.xlane.xlu0 %333
    %v335 = vrcp.pop %v334
    %v336 = vmul.f32 %v331, %v335
    %337 = vst.msk [vmem:[#allocation2] sm:$0xff] %vm325, %v336
    // Predicated region
    $region14: #{tpu_custom_call.1} parent=1 // pred_check
      _
    $region15: #{tpu_custom_call.1} parent=1 // pred_check_branch
      %339 = sbr.rel (0) target = $region17
    $region16: #{tpu_custom_call.1} parent=1 // pred_region
      %s341 = ssub.s32 128, 128
      %342 = vsyncadd [#allocation3], %s341
      %s344 = sshll.u32 [#allocation2], 4
      %s345 = int_to_ptr.vmem [resolvable:$true] %s344
      %347 = dma.vmem_to_hbm [thread:$0]  %s345, 128, %s3, [#allocation3]
    $region17: #{tpu_custom_call.1} parent=1 // pred_fallthru
      _
    // Predicated region
    $region18: #{tpu_custom_call.1} parent=1 // pred_check
      _
    $region19: #{tpu_custom_call.1} parent=1 // pred_check_branch
      %349 = sbr.rel (0) target = $region21
    $region20: #{tpu_custom_call.1} parent=1 // pred_region
      %s351 = ssub.s32 16, 16
      %352 = vsyncadd [#allocation5], %s351
      %s354 = sshll.u32 [#allocation4], 4
      %s355 = int_to_ptr.vmem [resolvable:$true] %s354
      %357 = dma.vmem_to_hbm [thread:$0]  %s355, 16, %s4, [#allocation5]
    $region21: #{tpu_custom_call.1} parent=1 // pred_fallthru
      _
    // Predicated region
    $region22: #{tpu_custom_call.1} parent=1 // pred_check
      _
    $region23: #{tpu_custom_call.1} parent=1 // pred_check_branch
      %359 = sbr.rel (0) target = $region25
    $region24: #{tpu_custom_call.1} parent=1 // pred_region
      %360 = dma.done [#allocation3], 128
    $region25: #{tpu_custom_call.1} parent=1 // pred_fallthru
      _
    // Predicated region
    $region26: #{tpu_custom_call.1} parent=1 // pred_check
      _
    $region27: #{tpu_custom_call.1} parent=1 // pred_check_branch
      %362 = sbr.rel (0) target = $region29
    $region28: #{tpu_custom_call.1} parent=1 // pred_region
      %363 = dma.done [#allocation5], 16
    $region29: #{tpu_custom_call.1} parent=1 // pred_fallthru
      _
    %364 = vsyncpa [#allocation3], 1
    %365 = vsyncpa [#allocation5], 1

</llo_original>
